<compile_context>
chip_gen: v5e
topology: v5e:2x2
jax: 0.10.0
libtpu: 0.0.40
codegen_flags: <defaults>
</compile_context>

<pallas_src>
import functools
import math

import jax
import jax.numpy as jnp
from jax import lax
from jax.experimental import pallas as pl
from jax.experimental.pallas import tpu as pltpu


# ---------------------------------------------------------------------------
# In-kernel math helpers
# ---------------------------------------------------------------------------
def _erf(x):
    # Abramowitz & Stegun 7.1.26, |err| < 1.5e-7 -> exact-GELU at fp32 accuracy.
    # The exp() lands on the EUP slot; the short polynomial stays on the VPU.
    a1, a2, a3, a4, a5 = 0.254829592, -0.284496736, 1.421413741, -1.453152027, 1.061405429
    p = 0.3275911
    sign = jnp.sign(x)
    ax = jnp.abs(x)
    t = 1.0 / (1.0 + p * ax)
    poly = ((((a5 * t + a4) * t + a3) * t + a2) * t + a1) * t
    return sign * (1.0 - poly * jnp.exp(-ax * ax))


def _gelu_exact(x):  # x: fp32
    return 0.5 * x * (1.0 + _erf(x * (1.0 / math.sqrt(2.0))))


def _layernorm(x, gamma, beta, eps=1e-5):  # x: fp32, gamma/beta: (1, E)
    mean = jnp.mean(x, axis=-1, keepdims=True)
    cent = x - mean
    var = jnp.mean(cent * cent, axis=-1, keepdims=True)
    return cent * lax.rsqrt(var + eps) * gamma.astype(x.dtype) + beta.astype(x.dtype)


# ---------------------------------------------------------------------------
# Kernel A: per-head K/V projection (q is computed later, inside kernel B).
#   grid = (B, S//TQ, H), all parallel.
#   x tile (TQ, E) @ fused per-head weight (E, 2*Dh) -> one (TQ, 2*Dh) matmul,
#   split into K / V tiles; outputs land head-major in (B, H, S, Dh).
# ---------------------------------------------------------------------------
def _kv_proj_kernel(x_ref, wkv_ref, k_ref, v_ref, *, dh):
    kv = jnp.dot(x_ref[...], wkv_ref[...],
                 preferred_element_type=jnp.float32)            # (TQ, 2*Dh)
    k_ref[...] = kv[:, :dh].astype(k_ref.dtype)
    v_ref[...] = kv[:, dh:].astype(v_ref.dtype)


# ---------------------------------------------------------------------------
# Kernel B: flash attention (online softmax over KV chunks) + output projection
#           + residual + LayerNorm1.
#   grid = (B, S//TQ, H, S//TKV); heads and KV chunks are "arbitrary" reduction
#   axes.  Per-head online-softmax state lives in f32 VMEM scratch; each head's
#   context is folded straight into the output projection accumulator
#   (acc += ctx @ wo[h]) -- no lane concatenation of heads.
#   The 1/sqrt(Dh) scale is pre-folded into wq.
# ---------------------------------------------------------------------------
def _flash_attn_kernel(x_ref, wq_ref, k_ref, v_ref, wo_ref, bo_ref, g1_ref, b1_ref,
                       h1_ref, q_sc, m_sc, l_sc, ctx_sc, acc_sc):
    h = pl.program_id(2)
    kv = pl.program_id(3)
    last_h = pl.num_programs(2) - 1
    last_kv = pl.num_programs(3) - 1

    @pl.when((h == 0) & (kv == 0))
    def _init_out():
        acc_sc[...] = jnp.zeros_like(acc_sc)

    @pl.when(kv == 0)
    def _init_head():
        # Per-head q projection from the resident x tile (scale folded into wq).
        q_sc[...] = jnp.dot(x_ref[...], wq_ref[...],
                            preferred_element_type=jnp.float32).astype(q_sc.dtype)
        m_sc[...] = jnp.full_like(m_sc[...], -jnp.inf)
        l_sc[...] = jnp.zeros_like(l_sc[...])
        ctx_sc[...] = jnp.zeros_like(ctx_sc[...])

    # Online-softmax update over the current KV chunk (fp32 math, MXU in dt).
    # TODO(synk): optional attention `mask` argument not wired in (mask=None only).
    s = lax.dot_general(q_sc[...], k_ref[...], (((1,), (1,)), ((), ())),
                        preferred_element_type=jnp.float32)          # (TQ, TKV)
    m_new = jnp.maximum(m_sc[...], jnp.max(s, axis=-1, keepdims=True))
    alpha = jnp.exp(m_sc[...] - m_new)
    p = jnp.exp(s - m_new)
    l_sc[...] = alpha * l_sc[...] + jnp.sum(p, axis=-1, keepdims=True)
    ctx_sc[...] = alpha * ctx_sc[...] + jnp.dot(p.astype(v_ref.dtype), v_ref[...],
                                                preferred_element_type=jnp.float32)
    m_sc[...] = m_new

    @pl.when(kv == last_kv)
    def _fold_head():
        # Exact normalization (finalize-sized work; removes approx-recip concern),
        # then fold this head into the output projection (rows of wo for head h).
        # TODO(synk): on v6e/v7x with Dh<=128, pairing 2 heads per step would widen
        # this contraction to K=256 (full MXU depth).
        ctx = ctx_sc[...] / l_sc[...]                                 # (TQ, Dh)
        acc_sc[...] += jnp.dot(ctx.astype(wo_ref.dtype), wo_ref[...],
                               preferred_element_type=jnp.float32)    # (TQ, E)

    @pl.when((h == last_h) & (kv == last_kv))
    def _finalize():
        attn = acc_sc[...] + bo_ref[...].astype(jnp.float32)
        resid = x_ref[...].astype(jnp.float32) + attn    # dropout = identity (eval)
        h1_ref[...] = _layernorm(resid, g1_ref[...], b1_ref[...]).astype(h1_ref.dtype)


# ---------------------------------------------------------------------------
# Kernel C: FFN + residual + LayerNorm2.
#   grid = (B, S//TQ, F//TF); the hidden dim F is the innermost "arbitrary"
#   reduction axis (w1 column tiles / w2 row tiles stream through VMEM).
# ---------------------------------------------------------------------------
def _ffn_kernel(h1_ref, w1_ref, b1_ref, w2_ref, b2_ref, g2_ref, be2_ref,
                o_ref, acc_ref):
    f = pl.program_id(2)

    @pl.when(f == 0)
    def _init():
        acc_ref[...] = jnp.zeros_like(acc_ref)

    h1 = h1_ref[...]                                                   # (TQ, E)
    u = jnp.dot(h1, w1_ref[...], preferred_element_type=jnp.float32)
    u = u + b1_ref[...].astype(jnp.float32)                            # (TQ, TF)
    g = _gelu_exact(u)
    acc_ref[...] += jnp.dot(g.astype(h1.dtype), w2_ref[...],
                            preferred_element_type=jnp.float32)        # (TQ, E)

    @pl.when(f == pl.num_programs(2) - 1)
    def _finalize():
        y = acc_ref[...] + b2_ref[...].astype(jnp.float32)
        resid = h1.astype(jnp.float32) + y               # dropout = identity (eval)
        o_ref[...] = _layernorm(resid, g2_ref[...], be2_ref[...]).astype(o_ref.dtype)


# ---------------------------------------------------------------------------
# Wrapper helpers
# ---------------------------------------------------------------------------
def _pick_tile(total, want, align):
    """Largest tile <= want that divides `total` and is a multiple of `align`;
    falls back to the full dimension (always legal as a full-extent block)."""
    if total <= want:
        return total
    t = (min(want, total) // align) * align
    while t >= align:
        if total % t == 0:
            return t
        t -= align
    return total


def _sublane_align(dtype):
    """Packed sublane size: 8 rows/vreg for 4-byte, 16 for 2-byte, 32 for 1-byte."""
    itemsize = jnp.dtype(dtype).itemsize
    return max(8, 8 * (4 // max(1, itemsize)))


def _vmem_limit_bytes():
    """Raise scoped VMEM above the 16/32 MiB defaults, leaving double-buffer
    headroom (~80% of physical, capped at 100 MiB -> ~51 MiB on v7x)."""
    cap = 64 << 20
    try:
        info = pltpu.get_tpu_info()
        cap = int(getattr(info, "vmem_capacity_bytes", cap))
    except Exception:
        pass
    return int(min(100 << 20, int(cap * 0.8)))


# ---------------------------------------------------------------------------
# Wrapper
# ---------------------------------------------------------------------------
def transformer_block(x, params, num_heads, *, tq=256, tkv=512, tf=512):
    B, S, E = x.shape
    F = params["w1"].shape[1]
    assert E % num_heads == 0, "embed_size must be divisible by num_heads"
    H, Dh = num_heads, E // num_heads
    dt = x.dtype

    sub = _sublane_align(dt)
    TQ = _pick_tile(S, tq, sub)     # sequence tile   (second-minor; dtype-packed sublanes)
    TKV = _pick_tile(S, tkv, sub)   # KV-chunk tile   (second-minor of (TKV, Dh) blocks)
    TF = _pick_tile(F, tf, 128)     # FFN hidden tile (lane dim -> multiple of 128)
    NQ, NKV, NF = S // TQ, S // TKV, F // TF

    vmem_limit = _vmem_limit_bytes()

    # Weight prep (plain JAX, once, outside the kernels).
    inv_scale = 1.0 / math.sqrt(Dh)
    # Fold 1/sqrt(Dh) into wq in fp32 *before* the dtype cast (exact fold).
    wq_h = (params["wq"].astype(jnp.float32) * inv_scale) \
        .reshape(E, H, Dh).transpose(1, 0, 2).astype(dt)                  # (H, E, Dh)
    wk32 = params["wk"].astype(jnp.float32).reshape(E, H, Dh)
    wv32 = params["wv"].astype(jnp.float32).reshape(E, H, Dh)
    wkv_h = jnp.concatenate([wk32, wv32], axis=-1) \
        .transpose(1, 0, 2).astype(dt)                                    # (H, E, 2*Dh)
    wo_h = params["wo"].reshape(H, Dh, E).astype(dt)                      # (H, Dh, E)
    w1 = params["w1"].astype(dt)
    w2 = params["w2"].astype(dt)
    bo, bf1, bf2 = params["bo"], params["bf1"], params["bf2"]
    g1, be1, g2, be2 = params["g1"], params["be1"], params["g2"], params["be2"]

    # ---------------- Kernel A: K/V projection -> (B, H, S, Dh) ----------------
    head_shape = jax.ShapeDtypeStruct((B, H, S, Dh), dt)
    kvo_spec = pl.BlockSpec((None, None, TQ, Dh), lambda b, s, h: (b, h, s, 0))
    k, v = pl.pallas_call(
        functools.partial(_kv_proj_kernel, dh=Dh),
        out_shape=(head_shape, head_shape),
        grid_spec=pltpu.PrefetchScalarGridSpec(
            num_scalar_prefetch=0,
            grid=(B, NQ, H),
            in_specs=[
                pl.BlockSpec((None, TQ, E), lambda b, s, h: (b, s, 0)),     # x tile
                pl.BlockSpec((None, E, 2 * Dh), lambda b, s, h: (h, 0, 0)),  # fused wkv
            ],
            out_specs=[kvo_spec, kvo_spec],
        ),
        compiler_params=pltpu.CompilerParams(
            dimension_semantics=("parallel", "parallel", "parallel"),
            vmem_limit_bytes=vmem_limit),
    )(x, wkv_h)

    # -- Kernel B: flash attention + out-projection + residual + LayerNorm1 ----
    vec_b = pl.BlockSpec((1, E), lambda b, qi, h, kv: (0, 0))
    h1 = pl.pallas_call(
        _flash_attn_kernel,
        out_shape=jax.ShapeDtypeStruct((B, S, E), dt),
        grid_spec=pltpu.PrefetchScalarGridSpec(
            num_scalar_prefetch=0,
            grid=(B, NQ, H, NKV),                  # heads & KV chunks = reductions
            in_specs=[
                pl.BlockSpec((None, TQ, E),         lambda b, qi, h, kv: (b, qi, 0)),   # x (resident)
                pl.BlockSpec((None, E, Dh),         lambda b, qi, h, kv: (h, 0, 0)),    # wq (scaled)
                pl.BlockSpec((None, None, TKV, Dh), lambda b, qi, h, kv: (b, h, kv, 0)),  # K chunk
                pl.BlockSpec((None, None, TKV, Dh), lambda b, qi, h, kv: (b, h, kv, 0)),  # V chunk
                pl.BlockSpec((None, Dh, E),         lambda b, qi, h, kv: (h, 0, 0)),    # wo rows of h
                vec_b, vec_b, vec_b,                                                    # bo, g1, be1
            ],
            out_specs=pl.BlockSpec((None, TQ, E), lambda b, qi, h, kv: (b, qi, 0)),
            scratch_shapes=[
                pltpu.VMEM((TQ, Dh), dt),            # q (per-head, persists over kv)
                pltpu.VMEM((TQ, 1), jnp.float32),    # m (running max)
                pltpu.VMEM((TQ, 1), jnp.float32),    # l (running denom)
                pltpu.VMEM((TQ, Dh), jnp.float32),   # ctx accumulator
                pltpu.VMEM((TQ, E), jnp.float32),    # output-projection accumulator
            ],
        ),
        compiler_params=pltpu.CompilerParams(
            dimension_semantics=("parallel", "parallel", "arbitrary", "arbitrary"),
            vmem_limit_bytes=vmem_limit),
    )(x, wq_h, k, v, wo_h, bo, g1, be1)

    # ---------------- Kernel C: FFN + residual + LayerNorm2 ----------------
    vec_c = pl.BlockSpec((1, E), lambda b, qi, f: (0, 0))
    out = pl.pallas_call(
        _ffn_kernel,
        out_shape=jax.ShapeDtypeStruct((B, S, E), dt),
        grid_spec=pltpu.PrefetchScalarGridSpec(
            num_scalar_prefetch=0,
            grid=(B, NQ, NF),                                  # F = reduction axis
            in_specs=[
                pl.BlockSpec((None, TQ, E), lambda b, qi, f: (b, qi, 0)),   # h1
                pl.BlockSpec((E, TF),       lambda b, qi, f: (0, f)),       # w1 column tile
                pl.BlockSpec((1, TF),       lambda b, qi, f: (0, f)),       # b1 tile
                pl.BlockSpec((TF, E),       lambda b, qi, f: (f, 0)),       # w2 row tile
                vec_c, vec_c, vec_c,                                        # b2, g2, be2
            ],
            out_specs=pl.BlockSpec((None, TQ, E), lambda b, qi, f: (b, qi, 0)),
            scratch_shapes=[pltpu.VMEM((TQ, E), jnp.float32)],
        ),
        compiler_params=pltpu.CompilerParams(
            dimension_semantics=("parallel", "parallel", "arbitrary"),
            vmem_limit_bytes=vmem_limit),
    )(h1, w1, bf1, w2, bf2, g2, be2)

    return out


# ---------------------------------------------------------------------------
# Pure-JAX reference (fp32) for correctness checking
# ---------------------------------------------------------------------------
def reference(x, params, num_heads):
    B, S, E = x.shape
    Dh = E // num_heads

    def ln(v, g, b, eps=1e-5):
        m = jnp.mean(v, -1, keepdims=True)
        var = jnp.mean((v - m) ** 2, -1, keepdims=True)
        return (v - m) / jnp.sqrt(var + eps) * g + b

    q = x @ params["wq"]
    k = x @ params["wk"]
    v = x @ params["wv"]
    q = q.reshape(B, S, num_heads, Dh).transpose(0, 2, 1, 3)
    k = k.reshape(B, S, num_heads, Dh).transpose(0, 2, 1, 3)
    v = v.reshape(B, S, num_heads, Dh).transpose(0, 2, 1, 3)
    att = jnp.einsum("bhqd,bhkd->bhqk", q, k) / math.sqrt(Dh)
    att = jax.nn.softmax(att, axis=-1)
    o = jnp.einsum("bhqk,bhkd->bhqd", att, v).transpose(0, 2, 1, 3).reshape(B, S, E)
    o = o @ params["wo"] + params["bo"]
    h1 = ln(x + o, params["g1"], params["be1"])
    ff = jax.nn.gelu(h1 @ params["w1"] + params["bf1"], approximate=False)
    ff = ff @ params["w2"] + params["bf2"]
    return ln(h1 + ff, params["g2"], params["be2"])


# ---------------------------------------------------------------------------
if __name__ == "__main__":
    # Small but lane-aligned shapes (E and F multiples of 128); tq/tkv/tf chosen so
    # the sequence, KV-chunk and FFN-reduction tilings are all exercised
    # (NQ = NKV = NF = 2, H = 4).
    B, S, E, H, F = 2, 128, 128, 4, 256

    key = jax.random.PRNGKey(0)
    ks = jax.random.split(key, 10)
    scale = 0.08
    params = {
        "wq": scale * jax.random.normal(ks[0], (E, E), jnp.float32),
        "wk": scale * jax.random.normal(ks[1], (E, E), jnp.float32),
        "wv": scale * jax.random.normal(ks[2], (E, E), jnp.float32),
        "wo": scale * jax.random.normal(ks[3], (E, E), jnp.float32),
        "bo": scale * jax.random.normal(ks[4], (1, E), jnp.float32),
        "g1": jnp.ones((1, E), jnp.float32),
        "be1": jnp.zeros((1, E), jnp.float32),
        "w1": scale * jax.random.normal(ks[5], (E, F), jnp.float32),
        "bf1": scale * jax.random.normal(ks[6], (1, F), jnp.float32),
        "w2": scale * jax.random.normal(ks[7], (F, E), jnp.float32),
        "bf2": scale * jax.random.normal(ks[8], (1, E), jnp.float32),
        "g2": jnp.ones((1, E), jnp.float32),
        "be2": jnp.zeros((1, E), jnp.float32),
    }
    x = jax.random.normal(ks[9], (B, S, E), jnp.float32)

    # --- fp32 run (strict check) ---
    out = jax.block_until_ready(
        transformer_block(x, params, H, tq=64, tkv=64, tf=128))
    ref = reference(x, params, H)
    assert out.shape == (B, S, E)
    assert jnp.allclose(out, ref, atol=5e-3, rtol=5e-3), (
        f"fp32 max abs err {jnp.max(jnp.abs(out - ref)):.3e}")

    # --- bf16 operands (MXU-native on v6e/v7x), fp32 accumulation in-kernel ---
    xb = x.astype(jnp.bfloat16)
    pb = {name: val.astype(jnp.bfloat16) for name, val in params.items()}
    outb = jax.block_until_ready(
        transformer_block(xb, pb, H, tq=64, tkv=64, tf=128))
    refb = reference(xb.astype(jnp.float32),
                     {name: val.astype(jnp.float32) for name, val in pb.items()}, H)
    # Loose end-to-end sanity tolerance for bf16 rounding through attention + FFN.
    assert jnp.allclose(outb.astype(jnp.float32), refb, atol=1e-1, rtol=1e-1), (
        f"bf16 max abs err {jnp.max(jnp.abs(outb.astype(jnp.float32) - refb)):.3e}")

    print("KERNEL_OK")
</pallas_src>

<mosaic_0001>
module attributes {stable_mosaic.version = 11 : i64} {
  func.func @_kv_proj_kernel(%arg0: i32, %arg1: i32, %arg2: i32, %arg3: memref<1x64x128xf32, #tpu.memory_space<vmem>>, %arg4: memref<1x128x64xf32, #tpu.memory_space<vmem>>, %arg5: memref<1x1x64x32xf32, #tpu.memory_space<vmem>>, %arg6: memref<1x1x64x32xf32, #tpu.memory_space<vmem>>) attributes {dimension_semantics = [#tpu.dimension_semantics<parallel>, #tpu.dimension_semantics<parallel>, #tpu.dimension_semantics<parallel>], iteration_bounds = array<i64: 2, 2, 4>, scalar_prefetch = 0 : i64, scratch_operands = 0 : i64, tpu.core_type = #tpu.core_type<tc>, window_params = [{transform_indices = @transform_0, window_bounds = array<i64: 1, 64, 128>}, {transform_indices = @transform_1, window_bounds = array<i64: 1, 128, 64>}, {transform_indices = @transform_2, window_bounds = array<i64: 1, 1, 64, 32>}, {transform_indices = @transform_3, window_bounds = array<i64: 1, 1, 64, 32>}]} {
    %c0 = arith.constant 0 : index
    %c0_0 = arith.constant 0 : index
    %c0_1 = arith.constant 0 : index
    %0 = vector.load %arg3[%c0, %c0_0, %c0_1] : memref<1x64x128xf32, #tpu.memory_space<vmem>>, vector<1x64x128xf32>
    %1 = vector.shape_cast %0 : vector<1x64x128xf32> to vector<64x128xf32>
    %c0_2 = arith.constant 0 : index
    %c0_3 = arith.constant 0 : index
    %c0_4 = arith.constant 0 : index
    %2 = vector.load %arg4[%c0_2, %c0_3, %c0_4] : memref<1x128x64xf32, #tpu.memory_space<vmem>>, vector<1x128x64xf32>
    %3 = vector.shape_cast %2 : vector<1x128x64xf32> to vector<128x64xf32>
    %cst = arith.constant dense<0.000000e+00> : vector<64x64xf32>
    %4 = tpu.matmul %1, %3, %cst {dimension_numbers = #tpu.dot_dimension_numbers<[1], [0], [0], [1], [0, 0, 1, 1], [], []>} : vector<64x128xf32>, vector<128x64xf32>, vector<64x64xf32> -> vector<64x64xf32>
    %5 = vector.extract_strided_slice %4 {offsets = [0, 0], sizes = [64, 32], strides = [1, 1]} : vector<64x64xf32> to vector<64x32xf32>
    %c0_5 = arith.constant 0 : index
    %c0_6 = arith.constant 0 : index
    %c0_7 = arith.constant 0 : index
    %c0_8 = arith.constant 0 : index
    %6 = vector.load %arg5[%c0_5, %c0_6, %c0_7, %c0_8] : memref<1x1x64x32xf32, #tpu.memory_space<vmem>>, vector<1x1x64x32xf32>
    %7 = vector.shape_cast %6 : vector<1x1x64x32xf32> to vector<64x32xf32>
    %8 = vector.shape_cast %5 : vector<64x32xf32> to vector<1x1x64x32xf32>
    tpu.vector_store %arg5[%c0_5, %c0_6, %c0_7, %c0_8], %8 {strides = array<i32>} : memref<1x1x64x32xf32, #tpu.memory_space<vmem>>, vector<1x1x64x32xf32>,
    %9 = vector.extract_strided_slice %4 {offsets = [0, 32], sizes = [64, 32], strides = [1, 1]} : vector<64x64xf32> to vector<64x32xf32>
    %c0_9 = arith.constant 0 : index
    %c0_10 = arith.constant 0 : index
    %c0_11 = arith.constant 0 : index
    %c0_12 = arith.constant 0 : index
    %10 = vector.load %arg6[%c0_9, %c0_10, %c0_11, %c0_12] : memref<1x1x64x32xf32, #tpu.memory_space<vmem>>, vector<1x1x64x32xf32>
    %11 = vector.shape_cast %10 : vector<1x1x64x32xf32> to vector<64x32xf32>
    %12 = vector.shape_cast %9 : vector<64x32xf32> to vector<1x1x64x32xf32>
    tpu.vector_store %arg6[%c0_9, %c0_10, %c0_11, %c0_12], %12 {strides = array<i32>} : memref<1x1x64x32xf32, #tpu.memory_space<vmem>>, vector<1x1x64x32xf32>,
    return
  }
  func.func @transform_0(%arg0: i32, %arg1: i32, %arg2: i32) -> (i32, i32, i32) {
    %c0_i32 = arith.constant 0 : i32
    %c0_i32_0 = arith.constant 0 : i32
    return %arg0, %arg1, %c0_i32 : i32, i32, i32
  }
  func.func @transform_1(%arg0: i32, %arg1: i32, %arg2: i32) -> (i32, i32, i32) {
    %c0_i32 = arith.constant 0 : i32
    %c0_i32_0 = arith.constant 0 : i32
    %c0_i32_1 = arith.constant 0 : i32
    return %arg2, %c0_i32, %c0_i32_0 : i32, i32, i32
  }
  func.func @transform_2(%arg0: i32, %arg1: i32, %arg2: i32) -> (i32, i32, i32, i32) {
    %c0_i32 = arith.constant 0 : i32
    %c0_i32_0 = arith.constant 0 : i32
    return %arg0, %arg2, %arg1, %c0_i32 : i32, i32, i32, i32
  }
  func.func @transform_3(%arg0: i32, %arg1: i32, %arg2: i32) -> (i32, i32, i32, i32) {
    %c0_i32 = arith.constant 0 : i32
    %c0_i32_0 = arith.constant 0 : i32
    return %arg0, %arg2, %arg1, %c0_i32 : i32, i32, i32, i32
  }
}

</mosaic_0001>

<llo_original>
// kernel: tpu_custom_call.1
$region0: #{tpu_custom_call.1}
  #allocation0 [shape = 'u32[]', space=smem, size = 0x4, offset = 0x4, fixed_abs, tag = 'smem constant byte address 0x4 - core index']
  #allocation1 [shape = 'u32[72,128]{1,0:T(1,128)}', space=vmem, size = 0x9000, scoped, tag = 'internal scratch']
  %s0 = inlined_call_operand.vmem [shape: f32[2,128,128], index: 0, kind: input, shape index: {}]
  %s1 = inlined_call_operand.vmem [shape: f32[4,128,64], index: 1, kind: input, shape index: {}]
  %s2 = inlined_call_operand.vmem [shape: f32[2,4,128,32], index: 2, kind: output, shape index: {0}]
  %s3 = inlined_call_operand.vmem [shape: f32[2,4,128,32], index: 3, kind: output, shape index: {1}]
  %4 = xla_tuple %s2, %s3
  %s5 = sld [smem:[#allocation0]]
  $region49: #{tpu_custom_call.1} parent=0
    _
  %s7 = ssub.s32 1, %s5
  %s8 = scalar_select 0, %s7, %s5
  loop: start=0, step=1, limit=18
  $region2: #{tpu_custom_call.1} parent=0 // loop_pre_header
    _
  $region3: #{tpu_custom_call.1} parent=0 // loop_header
    %s10 = sphi 0, %s14
    %p11 = scmp.ge.s32.totalorder %s10, 18
    %s17 = sphi 0, %s36
    %s18 = sphi 0, %s32
    %s19 = sphi 0, %s28
    %s20 = sphi 0, %s17
    %s21 = sphi 0, %s18
    %s22 = sphi 0, %s19
    %s23 = sphi 0, %s20
    %s24 = sphi 0, %s21
    %s25 = sphi 0, %s22
    %s41 = sphi 0, %s43
    %s44 = sphi 0, %s41
    %s45 = sphi 0, %s44
    %s61 = sphi 0, %s45
    %s67 = sphi 0, %s69
    %s70 = sphi 0, %s67
    %s71 = sphi 0, %s70
    %s87 = sphi 0, %s71
    %s97 = sphi 0, %s99
    %s100 = sphi 0, %s97
    %s101 = sphi 0, %s100
    %s117 = sphi 0, %s101
    %s127 = sphi 0, %s129
    %s130 = sphi 0, %s127
    %s131 = sphi 0, %s130
    %s147 = sphi 0, %s131
  $region4: #{tpu_custom_call.1} parent=0 // loop_header_branch
    %13 = sbr.rel (%p11) target = $region8
  $region5: #{tpu_custom_call.1} parent=0 // loop_body
    %s15 = ssub.s32 %s10, 1
    %s16 = ssub.s32 %s10, 2
    %s26 = sadd.s32 1, %s19
    %p27 = scmp.ge.s32.totalorder %s26, 4
    %s28 = scalar_select %p27, 0, %s26
    %s29 = sadd.s32 1, %s18
    %s30 = scalar_select %p27, %s29, %s18
    %p31 = scmp.ge.s32.totalorder %s30, 2
    %s32 = scalar_select %p31, 0, %s30
    %s33 = sadd.s32 1, %s17
    %s34 = scalar_select %p31, %s33, %s17
    %p35 = scmp.ge.s32.totalorder %s34, 2
    %s36 = scalar_select %p35, 0, %s34
    %s37 = ssub.s32 %s17, %s36
    %s38 = ssub.s32 %s18, %s32
    %s39 = sor.u32 %s37, %s38
    %p40 = scmp.eq.s32.totalorder %s39, 0
    %s42 = sadd.s32 %s41, 1
    %s43 = scalar_select %p40, %s41, %s42
    %p46 = pneg %p40
    %p47 = scmp.eq.s32.totalorder %s10, 15
    %p48 = por %p46, %p47
    %p49 = scmp.ne.s32.totalorder %s41, %s44
    %p50 = scmp.eq.s32.totalorder %s10, 0
    %p51 = por %p49, %p50
    %p52 = scmp.ne.s32.totalorder %s41, %s44
    %p53 = scmp.eq.s32.totalorder %s15, 15
    %p54 = por %p52, %p53
    %p55 = scmp.ne.s32.totalorder %s44, %s45
    %p56 = scmp.eq.s32.totalorder %s15, 0
    %p57 = por %p55, %p56
    %p58 = scmp.ne.s32.totalorder %s44, %s45
    %p59 = scmp.eq.s32.totalorder %s16, 15
    %p60 = por %p58, %p59
    %p62 = scmp.ne.s32.totalorder %s45, %s61
    %p63 = scmp.eq.s32.totalorder %s16, 0
    %p64 = por %p62, %p63
    %s65 = ssub.s32 %s19, %s28
    %p66 = scmp.eq.s32.totalorder %s65, 0
    %s68 = sadd.s32 %s67, 1
    %s69 = scalar_select %p66, %s67, %s68
    %p72 = pneg %p66
    %p73 = scmp.eq.s32.totalorder %s10, 15
    %p74 = por %p72, %p73
    %p75 = scmp.ne.s32.totalorder %s67, %s70
    %p76 = scmp.eq.s32.totalorder %s10, 0
    %p77 = por %p75, %p76
    %p78 = scmp.ne.s32.totalorder %s67, %s70
    %p79 = scmp.eq.s32.totalorder %s15, 15
    %p80 = por %p78, %p79
    %p81 = scmp.ne.s32.totalorder %s70, %s71
    %p82 = scmp.eq.s32.totalorder %s15, 0
    %p83 = por %p81, %p82
    %p84 = scmp.ne.s32.totalorder %s70, %s71
    %p85 = scmp.eq.s32.totalorder %s16, 15
    %p86 = por %p84, %p85
    %p88 = scmp.ne.s32.totalorder %s71, %s87
    %p89 = scmp.eq.s32.totalorder %s16, 0
    %p90 = por %p88, %p89
    %s91 = ssub.s32 %s17, %s36
    %s92 = ssub.s32 %s19, %s28
    %s93 = sor.u32 %s91, %s92
    %s94 = ssub.s32 %s18, %s32
    %s95 = sor.u32 %s93, %s94
    %p96 = scmp.eq.s32.totalorder %s95, 0
    %s98 = sadd.s32 %s97, 1
    %s99 = scalar_select %p96, %s97, %s98
    %p102 = pneg %p96
    %p103 = scmp.eq.s32.totalorder %s10, 15
    %p104 = por %p102, %p103
    %p105 = scmp.ne.s32.totalorder %s97, %s100
    %p106 = scmp.eq.s32.totalorder %s10, 0
    %p107 = por %p105, %p106
    %p108 = scmp.ne.s32.totalorder %s97, %s100
    %p109 = scmp.eq.s32.totalorder %s15, 15
    %p110 = por %p108, %p109
    %p111 = scmp.ne.s32.totalorder %s100, %s101
    %p112 = scmp.eq.s32.totalorder %s15, 0
    %p113 = por %p111, %p112
    %p114 = scmp.ne.s32.totalorder %s100, %s101
    %p115 = scmp.eq.s32.totalorder %s16, 15
    %p116 = por %p114, %p115
    %p118 = scmp.ne.s32.totalorder %s101, %s117
    %p119 = scmp.eq.s32.totalorder %s16, 0
    %p120 = por %p118, %p119
    %s121 = ssub.s32 %s17, %s36
    %s122 = ssub.s32 %s19, %s28
    %s123 = sor.u32 %s121, %s122
    %s124 = ssub.s32 %s18, %s32
    %s125 = sor.u32 %s123, %s124
    %p126 = scmp.eq.s32.totalorder %s125, 0
    %s128 = sadd.s32 %s127, 1
    %s129 = scalar_select %p126, %s127, %s128
    %p132 = pneg %p126
    %p133 = scmp.eq.s32.totalorder %s10, 15
    %p134 = por %p132, %p133
    %p135 = scmp.ne.s32.totalorder %s127, %s130
    %p136 = scmp.eq.s32.totalorder %s10, 0
    %p137 = por %p135, %p136
    %p138 = scmp.ne.s32.totalorder %s127, %s130
    %p139 = scmp.eq.s32.totalorder %s15, 15
    %p140 = por %p138, %p139
    %p141 = scmp.ne.s32.totalorder %s130, %s131
    %p142 = scmp.eq.s32.totalorder %s15, 0
    %p143 = por %p141, %p142
    %p144 = scmp.ne.s32.totalorder %s130, %s131
    %p145 = scmp.eq.s32.totalorder %s16, 15
    %p146 = por %p144, %p145
    %p148 = scmp.ne.s32.totalorder %s131, %s147
    %p149 = scmp.eq.s32.totalorder %s16, 0
    %p150 = por %p148, %p149
    %p151 = scmp.le.s32.totalorder 1, %s10
    %p152 = scmp.lt.s32.totalorder %s10, 17
    %p153 = pnand %p151, %p152
    %p154 = pneg %p153
    // Predicated region
    $region9: #{tpu_custom_call.1} parent=5 // pred_check
      _
    $region10: #{tpu_custom_call.1} parent=5 // pred_check_branch
      %156 = sbr.rel (%p153) target = $region12
    $region11: #{tpu_custom_call.1} parent=5 // pred_region
      %s157 = ssub.s32 %s10, 1
    $region12: #{tpu_custom_call.1} parent=5 // pred_fallthru
      _
    %p158 = scmp.lt.s32.totalorder %s10, 16
    // Predicated region
    $region13: #{tpu_custom_call.1} parent=5 // pred_check
      %p159 = pneg %p158
    $region14: #{tpu_custom_call.1} parent=5 // pred_check_branch
      %161 = sbr.rel (%p159) target = $region16
    $region15: #{tpu_custom_call.1} parent=5 // pred_region
      // Predicated region
      $region17: #{tpu_custom_call.1} parent=15 // pred_check
        %p162 = pneg %p51
      $region18: #{tpu_custom_call.1} parent=15 // pred_check_branch
        %164 = sbr.rel (%p162) target = $region20
      $region19: #{tpu_custom_call.1} parent=15 // pred_region
        %s165 = smul.u32 8, %s18
        %p166 = scmp.lt.s32.totalorder %s17, 1
        %s167 = scalar_select %p166, %s17, 1
        %p168 = scmp.lt.s32.totalorder %s165, 15
        %s169 = scalar_select %p168, %s165, 15
        %s170 = smul.addr %s167, 16
        %s171 = sadd.s32 %s169, %s170
        %s172 = smul.addr %s171, 8
        %s173 = scalar_lea.vmem %s0, %s172
        %s174 = smul.u32 8, %s18
      $region20: #{tpu_custom_call.1} parent=15 // pred_fallthru
        _
      // Predicated region
      $region21: #{tpu_custom_call.1} parent=15 // pred_check
        %p175 = pneg %p77
      $region22: #{tpu_custom_call.1} parent=15 // pred_check_branch
        %177 = sbr.rel (%p175) target = $region24
      $region23: #{tpu_custom_call.1} parent=15 // pred_region
        %p178 = scmp.lt.s32.totalorder %s19, 3
        %s179 = scalar_select %p178, %s19, 3
        %s180 = smul.addr %s179, 16
        %s181 = smul.addr %s180, 8
        %s182 = scalar_lea.vmem %s1, %s181
      $region24: #{tpu_custom_call.1} parent=15 // pred_fallthru
        _
    $region16: #{tpu_custom_call.1} parent=5 // pred_fallthru
      _
    %p183 = scmp.le.s32.totalorder 1, %s10
    %p184 = scmp.lt.s32.totalorder %s10, 17
    %p185 = pnand %p183, %p184
    %p186 = pneg %p185
    // Predicated region
    $region25: #{tpu_custom_call.1} parent=5 // pred_check
      _
    $region26: #{tpu_custom_call.1} parent=5 // pred_check_branch
      %188 = sbr.rel (%p185) target = $region28
    $region27: #{tpu_custom_call.1} parent=5 // pred_region
      %s189 = ssub.s32 %s10, 1
      %s190 = smul.u32 8, %s21
      %p191 = scmp.lt.s32.totalorder %s20, 1
      %s192 = scalar_select %p191, %s20, 1
      %p193 = scmp.lt.s32.totalorder %s190, 15
      %s194 = scalar_select %p193, %s190, 15
      %s195 = smul.addr %s192, 16
      %s196 = sadd.s32 %s194, %s195
      %s197 = smul.addr %s196, 8
      %s198 = scalar_lea.vmem %s0, %s197
      %p199 = pneg %p57
      %p200 = pneg %p54
      %p201 = scmp.lt.s32.totalorder %s22, 3
      %s202 = scalar_select %p201, %s22, 3
      %s203 = smul.addr %s202, 16
      %s204 = smul.addr %s203, 8
      %s205 = scalar_lea.vmem %s1, %s204
      %p206 = pneg %p83
      %p207 = pneg %p80
      %p208 = pneg %p113
      %p209 = pneg %p110
      %s210 = smul.u32 8, %s21
      %p211 = scmp.lt.s32.totalorder %s20, 1
      %s212 = scalar_select %p211, %s20, 1
      %p213 = scmp.lt.s32.totalorder %s22, 3
      %s214 = scalar_select %p213, %s22, 3
      %p215 = scmp.lt.s32.totalorder %s210, 15
      %s216 = scalar_select %p215, %s210, 15
      %s217 = smul.addr %s214, 16
      %s218 = sadd.s32 %s216, %s217
      %s219 = smul.addr %s212, 64
      %s220 = sadd.s32 %s218, %s219
      %s221 = smul.addr %s220, 8
      %s222 = scalar_lea.vmem %s2, %s221
      %p223 = pneg %p143
      %p224 = pneg %p140
      %s225 = smul.u32 8, %s21
      %p226 = scmp.lt.s32.totalorder %s20, 1
      %s227 = scalar_select %p226, %s20, 1
      %p228 = scmp.lt.s32.totalorder %s22, 3
      %s229 = scalar_select %p228, %s22, 3
      %p230 = scmp.lt.s32.totalorder %s225, 15
      %s231 = scalar_select %p230, %s225, 15
      %s232 = smul.addr %s229, 16
      %s233 = sadd.s32 %s231, %s232
      %s234 = smul.addr %s227, 64
      %s235 = sadd.s32 %s233, %s234
      %s236 = smul.addr %s235, 8
      %s237 = scalar_lea.vmem %s3, %s236
      %s238 = smul.u32 8, %s21
      %p239 = scmp.lt.s32.totalorder %s20, 1
      %s240 = scalar_select %p239, %s20, 1
      %p241 = scmp.lt.s32.totalorder %s238, 15
      %s242 = scalar_select %p241, %s238, 15
      %s243 = smul.addr %s240, 16
      %s244 = sadd.s32 %s242, %s243
      %s245 = smul.addr %s244, 8
      %s246 = scalar_lea.vmem %s0, %s245
      %s247 = smul.u32 8, %s21
      %p248 = scmp.lt.s32.totalorder %s22, 3
      %s249 = scalar_select %p248, %s22, 3
      %s250 = smul.addr %s249, 16
      %s251 = smul.addr %s250, 8
      %s252 = scalar_lea.vmem %s1, %s251
      %s253 = smul.u32 8, %s21
      %p254 = scmp.lt.s32.totalorder %s20, 1
      %s255 = scalar_select %p254, %s20, 1
      %p256 = scmp.lt.s32.totalorder %s22, 3
      %s257 = scalar_select %p256, %s22, 3
      %p258 = scmp.lt.s32.totalorder %s253, 15
      %s259 = scalar_select %p258, %s253, 15
      %s260 = smul.addr %s257, 16
      %s261 = sadd.s32 %s259, %s260
      %s262 = smul.addr %s255, 64
      %s263 = sadd.s32 %s261, %s262
      %s264 = smul.addr %s263, 8
      %s265 = scalar_lea.vmem %s2, %s264
      %s266 = smul.u32 8, %s21
      %s267 = smul.u32 8, %s21
      %p268 = scmp.lt.s32.totalorder %s20, 1
      %s269 = scalar_select %p268, %s20, 1
      %p270 = scmp.lt.s32.totalorder %s22, 3
      %s271 = scalar_select %p270, %s22, 3
      %p272 = scmp.lt.s32.totalorder %s267, 15
      %s273 = scalar_select %p272, %s267, 15
      %s274 = smul.addr %s271, 16
      %s275 = sadd.s32 %s273, %s274
      %s276 = smul.addr %s269, 64
      %s277 = sadd.s32 %s275, %s276
      %s278 = smul.addr %s277, 8
      %s279 = scalar_lea.vmem %s3, %s278
      %s280 = smul.u32 8, %s21
      %v281 = vld [vmem:[%s246] sm:$0xff]
      %v282 = vld [vmem:[%s246 + $0x8] sm:$0xff]
      %v283 = vld [vmem:[%s246 + $0x10] sm:$0xff]
      %v284 = vld [vmem:[%s246 + $0x18] sm:$0xff]
      %v285 = vld [vmem:[%s246 + $0x20] sm:$0xff]
      %v286 = vld [vmem:[%s246 + $0x28] sm:$0xff]
      %v287 = vld [vmem:[%s246 + $0x30] sm:$0xff]
      %v288 = vld [vmem:[%s246 + $0x38] sm:$0xff]
      %v289 = vld [vmem:[%s252] sm:$0xff]
      %v290 = vld [vmem:[%s252 + $0x8] sm:$0xff]
      %v291 = vld [vmem:[%s252 + $0x10] sm:$0xff]
      %v292 = vld [vmem:[%s252 + $0x18] sm:$0xff]
      %v293 = vld [vmem:[%s252 + $0x20] sm:$0xff]
      %v294 = vld [vmem:[%s252 + $0x28] sm:$0xff]
      %v295 = vld [vmem:[%s252 + $0x30] sm:$0xff]
      %v296 = vld [vmem:[%s252 + $0x38] sm:$0xff]
      %v297 = vld [vmem:[%s252 + $0x40] sm:$0xff]
      %v298 = vld [vmem:[%s252 + $0x48] sm:$0xff]
      %v299 = vld [vmem:[%s252 + $0x50] sm:$0xff]
      %v300 = vld [vmem:[%s252 + $0x58] sm:$0xff]
      %v301 = vld [vmem:[%s252 + $0x60] sm:$0xff]
      %v302 = vld [vmem:[%s252 + $0x68] sm:$0xff]
      %v303 = vld [vmem:[%s252 + $0x70] sm:$0xff]
      %v304 = vld [vmem:[%s252 + $0x78] sm:$0xff]
      %305 = vmatpush.msra.mxu0 %v304
      %306 = vmatpush.msra.mxu0 %v303
      %307 = vmatpush.msra.mxu0 %v302
      %308 = vmatpush.msra.mxu0 %v301
      %309 = vmatpush.msra.mxu0 %v300
      %310 = vmatpush.msra.mxu0 %v299
      %311 = vmatpush.msra.mxu0 %v298
      %312 = vmatpush.msra.mxu0 %v297
      %313 = vmatpush.msra.mxu0 %v296
      %314 = vmatpush.msra.mxu0 %v295
      %315 = vmatpush.msra.mxu0 %v294
      %316 = vmatpush.msra.mxu0 %v293
      %317 = vmatpush.msra.mxu0 %v292
      %318 = vmatpush.msra.mxu0 %v291
      %319 = vmatpush.msra.mxu0 %v290
      %320 = vmatpush.msra.mxu0 %v289
      %321 = vmatmul.f32.gmra.mxu0 %v281
      %v322 = vpop.f32.mrf.mxu0
      %v323 = vadd.f32 0.0, %v322
      %324 = vmatmul.f32.gmra.mxu0 %v282
      %v325 = vpop.f32.mrf.mxu0
      %v326 = vadd.f32 0.0, %v325
      %327 = vmatmul.f32.gmra.mxu0 %v283
      %v328 = vpop.f32.mrf.mxu0
      %v329 = vadd.f32 0.0, %v328
      %330 = vmatmul.f32.gmra.mxu0 %v284
      %v331 = vpop.f32.mrf.mxu0
      %v332 = vadd.f32 0.0, %v331
      %333 = vmatmul.f32.gmra.mxu0 %v285
      %v334 = vpop.f32.mrf.mxu0
      %v335 = vadd.f32 0.0, %v334
      %336 = vmatmul.f32.gmra.mxu0 %v286
      %v337 = vpop.f32.mrf.mxu0
      %v338 = vadd.f32 0.0, %v337
      %339 = vmatmul.f32.gmra.mxu0 %v287
      %v340 = vpop.f32.mrf.mxu0
      %v341 = vadd.f32 0.0, %v340
      %342 = vmatmul.f32.gmra.mxu0 %v288
      %v343 = vpop.f32.mrf.mxu0
      %v344 = vadd.f32 0.0, %v343
      %345 = vdwg.mxu0
      %vm346 = vcmask 261120
      %347 = vst.msk [vmem:[%s265] sm:$0xff] %vm346, %v323
      %348 = vst.msk [vmem:[%s265 + $0x8] sm:$0xff] %vm346, %v326
      %349 = vst.msk [vmem:[%s265 + $0x10] sm:$0xff] %vm346, %v329
      %350 = vst.msk [vmem:[%s265 + $0x18] sm:$0xff] %vm346, %v332
      %351 = vst.msk [vmem:[%s265 + $0x20] sm:$0xff] %vm346, %v335
      %352 = vst.msk [vmem:[%s265 + $0x28] sm:$0xff] %vm346, %v338
      %353 = vst.msk [vmem:[%s265 + $0x30] sm:$0xff] %vm346, %v341
      %354 = vst.msk [vmem:[%s265 + $0x38] sm:$0xff] %vm346, %v344
      %363 = vrot.lane.b32.xlu0 %v323, 96
      %v364 = vpop.permute.xlu0 %363
      %365 = vrot.lane.b32.xlu0 %v326, 96
      %v366 = vpop.permute.xlu0 %365
      %367 = vrot.lane.b32.xlu0 %v329, 96
      %v368 = vpop.permute.xlu0 %367
      %369 = vrot.lane.b32.xlu0 %v332, 96
      %v370 = vpop.permute.xlu0 %369
      %371 = vrot.lane.b32.xlu0 %v335, 96
      %v372 = vpop.permute.xlu0 %371
      %373 = vrot.lane.b32.xlu0 %v338, 96
      %v374 = vpop.permute.xlu0 %373
      %375 = vrot.lane.b32.xlu0 %v341, 96
      %v376 = vpop.permute.xlu0 %375
      %377 = vrot.lane.b32.xlu0 %v344, 96
      %v378 = vpop.permute.xlu0 %377
      %387 = vst.msk [vmem:[%s279] sm:$0xff] %vm346, %v364
      %388 = vst.msk [vmem:[%s279 + $0x8] sm:$0xff] %vm346, %v366
      %389 = vst.msk [vmem:[%s279 + $0x10] sm:$0xff] %vm346, %v368
      %390 = vst.msk [vmem:[%s279 + $0x18] sm:$0xff] %vm346, %v370
      %391 = vst.msk [vmem:[%s279 + $0x20] sm:$0xff] %vm346, %v372
      %392 = vst.msk [vmem:[%s279 + $0x28] sm:$0xff] %vm346, %v374
      %393 = vst.msk [vmem:[%s279 + $0x30] sm:$0xff] %vm346, %v376
      %394 = vst.msk [vmem:[%s279 + $0x38] sm:$0xff] %vm346, %v378
      %s395 = smul.u32 8, %s21
      %p396 = scmp.lt.s32.totalorder %s20, 1
      %s397 = scalar_select %p396, %s20, 1
      %p398 = scmp.lt.s32.totalorder %s22, 3
      %s399 = scalar_select %p398, %s22, 3
      %p400 = scmp.lt.s32.totalorder %s395, 15
      %s401 = scalar_select %p400, %s395, 15
      %s402 = smul.addr %s399, 16
      %s403 = sadd.s32 %s401, %s402
      %s404 = smul.addr %s397, 64
      %s405 = sadd.s32 %s403, %s404
      %s406 = smul.addr %s405, 8
      %s407 = scalar_lea.vmem %s2, %s406
      %s408 = smul.u32 8, %s21
      %p409 = scmp.lt.s32.totalorder %s20, 1
      %s410 = scalar_select %p409, %s20, 1
      %p411 = scmp.lt.s32.totalorder %s22, 3
      %s412 = scalar_select %p411, %s22, 3
      %p413 = scmp.lt.s32.totalorder %s408, 15
      %s414 = scalar_select %p413, %s408, 15
      %s415 = smul.addr %s412, 16
      %s416 = sadd.s32 %s414, %s415
      %s417 = smul.addr %s410, 64
      %s418 = sadd.s32 %s416, %s417
      %s419 = smul.addr %s418, 8
      %s420 = scalar_lea.vmem %s3, %s419
      // Predicated region
      $region29: #{tpu_custom_call.1} parent=27 // pred_check
        %p421 = pneg %p110
      $region30: #{tpu_custom_call.1} parent=27 // pred_check_branch
        %423 = sbr.rel (%p421) target = $region32
      $region31: #{tpu_custom_call.1} parent=27 // pred_region
        %s424 = smul.u32 8, %s21
      $region32: #{tpu_custom_call.1} parent=27 // pred_fallthru
        _
      // Predicated region
      $region33: #{tpu_custom_call.1} parent=27 // pred_check
        %p425 = pneg %p140
      $region34: #{tpu_custom_call.1} parent=27 // pred_check_branch
        %427 = sbr.rel (%p425) target = $region36
      $region35: #{tpu_custom_call.1} parent=27 // pred_region
        %s428 = smul.u32 8, %s21
      $region36: #{tpu_custom_call.1} parent=27 // pred_fallthru
        _
    $region28: #{tpu_custom_call.1} parent=5 // pred_fallthru
      _
    %p429 = scmp.le.s32.totalorder 2, %s10
    // Predicated region
    $region37: #{tpu_custom_call.1} parent=5 // pred_check
      %p430 = pneg %p429
    $region38: #{tpu_custom_call.1} parent=5 // pred_check_branch
      %432 = sbr.rel (%p430) target = $region40
    $region39: #{tpu_custom_call.1} parent=5 // pred_region
      %s433 = ssub.s32 %s10, 2
      // Predicated region
      $region41: #{tpu_custom_call.1} parent=39 // pred_check
        %p434 = pneg %p116
      $region42: #{tpu_custom_call.1} parent=39 // pred_check_branch
        %436 = sbr.rel (%p434) target = $region44
      $region43: #{tpu_custom_call.1} parent=39 // pred_region
        %s437 = smul.u32 8, %s24
        %p438 = scmp.lt.s32.totalorder %s23, 1
        %s439 = scalar_select %p438, %s23, 1
        %p440 = scmp.lt.s32.totalorder %s25, 3
        %s441 = scalar_select %p440, %s25, 3
        %p442 = scmp.lt.s32.totalorder %s437, 15
        %s443 = scalar_select %p442, %s437, 15
        %s444 = smul.addr %s441, 16
        %s445 = sadd.s32 %s443, %s444
        %s446 = smul.addr %s439, 64
        %s447 = sadd.s32 %s445, %s446
        %s448 = smul.addr %s447, 8
        %s449 = scalar_lea.vmem %s2, %s448
      $region44: #{tpu_custom_call.1} parent=39 // pred_fallthru
        _
      // Predicated region
      $region45: #{tpu_custom_call.1} parent=39 // pred_check
        %p450 = pneg %p146
      $region46: #{tpu_custom_call.1} parent=39 // pred_check_branch
        %452 = sbr.rel (%p450) target = $region48
      $region47: #{tpu_custom_call.1} parent=39 // pred_region
        %s453 = smul.u32 8, %s24
        %p454 = scmp.lt.s32.totalorder %s23, 1
        %s455 = scalar_select %p454, %s23, 1
        %p456 = scmp.lt.s32.totalorder %s25, 3
        %s457 = scalar_select %p456, %s25, 3
        %p458 = scmp.lt.s32.totalorder %s453, 15
        %s459 = scalar_select %p458, %s453, 15
        %s460 = smul.addr %s457, 16
        %s461 = sadd.s32 %s459, %s460
        %s462 = smul.addr %s455, 64
        %s463 = sadd.s32 %s461, %s462
        %s464 = smul.addr %s463, 8
        %s465 = scalar_lea.vmem %s3, %s464
      $region48: #{tpu_custom_call.1} parent=39 // pred_fallthru
        _
    $region40: #{tpu_custom_call.1} parent=5 // pred_fallthru
      _
  $region6: #{tpu_custom_call.1} parent=0 // loop_footer
    %s14 = sadd.s32 1, %s10
  $region7: #{tpu_custom_call.1} parent=0 // loop_footer_branch
    %9 = sbr.rel target = $region3
  $region8: #{tpu_custom_call.1} parent=0 // loop_exit
    _

</llo_original>
